<compile_context>
chip_gen: v7x
topology: tpu7x:2x2x1
jax: 0.10.0
libtpu: 0.0.40
codegen_flags: <defaults>
</compile_context>

<pallas_src>
import math
from functools import partial

import jax
import jax.numpy as jnp
from jax.experimental import pallas as pl
from jax.experimental.pallas import tpu as pltpu

_LANES = 128  # output-slab / fused-head width (one vreg lane row)


def _round_up(n, m):
    return ((n + m - 1) // m) * m


def _mm(a, w_ref, b_ref):
    """Matmul against a resident weight tile with f32 accumulation."""
    w = w_ref[...]
    return jnp.dot(a.astype(w.dtype), w, preferred_element_type=jnp.float32) + b_ref[...]


def _ppo_sample_kernel(num_actions,
                       x_ref, eps_ref,
                       w1_ref, b1_ref, w2_ref, b2_ref, wh_ref, bh_ref,
                       const_ref,
                       slab_ref):
    A = num_actions
    # Trunk.
    h1 = jnp.maximum(_mm(x_ref[...], w1_ref, b1_ref), 0.0)
    h2 = jnp.maximum(_mm(h1, w2_ref, b2_ref), 0.0)
    # Fused, lane-padded head: cols [0..A-1]=mu, col A=-logp_const (bias), col A+1=value.
    head = _mm(h2, wh_ref, bh_ref)                         # [Bt, 128]
    c = const_ref[...]                                     # [A+2, 128] fused constants
    sel_std = c[:A, :]                                     # diag(std) placed on action lanes
    onehot = c[A:A + 1, :]                                 # 1.0 at the log-prob lane
    eps = eps_ref[...]                                     # [Bt, A] native width
    # Reparameterized noise scattered onto the slab's action lanes (std folded in).
    noise = jnp.dot(eps, sel_std, preferred_element_type=jnp.float32)   # [Bt, 128]
    # -((action-mu)^2)/(2 std^2) == -0.5*eps^2; constant term is baked into head bias.
    logp_var = -0.5 * jnp.sum(eps * eps, axis=1, keepdims=True)         # [Bt, 1]
    # Packed slab: action | logp | value | zeros — one unmasked 128-lane store.
    slab_ref[...] = head + noise + logp_var * onehot


def _ppo_eval_kernel(num_actions,
                     x_ref, act_ref,
                     w1_ref, b1_ref, w2_ref, b2_ref, wh_ref, bh_ref,
                     const_ref,
                     slab_ref):
    A = num_actions
    h1 = jnp.maximum(_mm(x_ref[...], w1_ref, b1_ref), 0.0)
    h2 = jnp.maximum(_mm(h1, w2_ref, b2_ref), 0.0)
    head = _mm(h2, wh_ref, bh_ref)                         # mu | -logp_const | value | 0...
    c = const_ref[...]
    sel = c[:A, :]                                         # identity placement of action lanes
    onehot = c[A:A + 1, :]
    inv2v = c[A + 1:A + 2, :]                              # 1/(2*std^2), zero beyond A
    act_p = jnp.dot(act_ref[...], sel, preferred_element_type=jnp.float32)  # [Bt, 128]
    d = act_p - head                                       # (action - mu) on action lanes
    logp_var = jnp.sum(-(d * d) * inv2v, axis=1, keepdims=True)  # padded lanes contribute 0
    slab_ref[...] = head + logp_var * onehot


def _prep_trunk(params, lanes):
    """Zero-pad the hidden dim to a multiple of 128 when large (lane-native trunk)."""
    w1, b1, w2, b2 = params["w1"], params["b1"], params["w2"], params["b2"]
    H = w1.shape[1]
    Hp = _round_up(H, lanes) if H > lanes else H
    if Hp != H:
        w1 = jnp.pad(w1, ((0, 0), (0, Hp - H)))
        b1 = jnp.pad(b1, ((0, 0), (0, Hp - H)))
        w2 = jnp.pad(w2, ((0, Hp - H), (0, Hp - H)))
        b2 = jnp.pad(b2, ((0, 0), (0, Hp - H)))
    return w1, b1, w2, b2, Hp


def _pack_head(params, lanes, hidden_padded, logp_bias):
    """Fuse actor/critic weights into one lane-padded [Hp, lanes] head.

    The compile-time log-prob constant is folded into the bias at lane A.
    """
    wa, wc, ba, bc = params["wa"], params["wc"], params["ba"], params["bc"]
    H, A = wa.shape
    assert A + 2 <= lanes, "action dim too large for a single output slab"
    whp = jnp.zeros((hidden_padded, lanes), wa.dtype)
    whp = whp.at[:H, :A].set(wa)
    whp = whp.at[:H, A + 1].set(wc[:, 0])
    bhp = jnp.zeros((1, lanes), jnp.float32)
    bhp = bhp.at[0, :A].set(ba.astype(jnp.float32)[0])
    bhp = bhp.at[0, A].set(logp_bias)                      # -(sum(log std) + A*0.5*log 2pi)
    bhp = bhp.at[0, A + 1].set(bc.astype(jnp.float32)[0, 0])
    return whp, bhp


def _const_block(std, lanes, sample):
    """One fused [A+2, lanes] constant block:
       rows 0..A-1: selector placing action lane a -> slab lane a
                    (scaled by std on the sample path, identity on the eval path)
       row A      : one-hot at the log-prob lane
       row A+1    : 1/(2*std^2) zero-padded (used only by the eval kernel)
    """
    A = std.shape[1]
    diag = std[0] if sample else jnp.ones((A,), jnp.float32)
    sel = jnp.zeros((A, lanes), jnp.float32).at[jnp.arange(A), jnp.arange(A)].set(diag)
    onehot = jnp.zeros((1, lanes), jnp.float32).at[0, A].set(1.0)
    inv2v = jnp.zeros((1, lanes), jnp.float32).at[0, :A].set(1.0 / (2.0 * std[0] * std[0]))
    return jnp.concatenate([sel, onehot, inv2v], axis=0)


def ppo_forward(params, x, action=None, *, eps=None,
                max_batch_tile=1024, single_buffer_weights=False):
    """Pallas implementation of PPONetwork.forward.

    params: dict with w1,b1,w2,b2,wa,ba,wc,bc,std (Linear weights stored [in, out]).
    x:      [B, state_size].
    action: optional [B, num_actions]; if None, samples via eps.
    eps:    standard-normal noise [B, num_actions]; required when action is None.
    single_buffer_weights: request pl.Buffered(1) on the resident weight blocks
        (v7x VMEM-headroom option for large hidden sizes).
    """
    x = x.astype(jnp.float32)
    B, S = x.shape
    A = params["wa"].shape[1]
    lanes = _LANES
    assert A + 2 <= lanes

    # --- fold parameters (done once in the wrapper, constant across the grid) ---
    std = params["std"].astype(jnp.float32).reshape(1, A)
    logp_bias = -(jnp.sum(jnp.log(std)) + A * 0.5 * math.log(2.0 * math.pi))
    w1, b1, w2, b2, hp = _prep_trunk(params, lanes)
    whp, bhp = _pack_head(params, lanes, hp, logp_bias)
    const = _const_block(std, lanes, sample=(action is None))

    # --- batch tiling (multiple of 8; >=2 tiles when B>=16 so the "parallel"
    #     axis can shard across v7x's two TensorCores) ---
    max_bt = max((int(max_batch_tile) // 8) * 8, 8)
    if B >= 16:
        b_tile = min(max_bt, _round_up(-(-B // 2), 8))
    else:
        b_tile = min(max_bt, _round_up(max(B, 1), 8))
    b_pad = _round_up(B, b_tile)
    grid = (b_pad // b_tile,)

    def bspec(width):
        return pl.BlockSpec((b_tile, width), lambda i: (i, 0))

    weight_kw = dict(pipeline_mode=pl.Buffered(1)) if single_buffer_weights else {}

    def wspec(arr):
        # Full-extent block, constant index -> DMA'd once, resident across grid.
        return pl.BlockSpec(arr.shape, lambda i: (0, 0), **weight_kw)

    weight_args = (w1, b1, w2, b2, whp, bhp, const)
    weight_specs = [wspec(a) for a in weight_args]

    x_p = jnp.pad(x, ((0, b_pad - B), (0, 0)))
    out_shape = jax.ShapeDtypeStruct((b_pad, lanes), jnp.float32)
    out_spec = pl.BlockSpec((b_tile, lanes), lambda i: (i, 0))

    # --- VMEM budget: only override when resident weights + double-buffered
    #     tiles would exceed v5e's 16 MiB scoped default (cap at v7x physical) ---
    wbufs = 1 if single_buffer_weights else 2
    est = (sum(int(a.size) * a.dtype.itemsize for a in weight_args) * wbufs
           + (b_tile * (S + A + lanes)) * 4 * 2 + (1 << 20))
    vmem_limit = None
    if est > (16 << 20):
        vmem_limit = min(_round_up(int(est) * 5 // 4, 1 << 20), 64 << 20)

    cparams = pltpu.CompilerParams(dimension_semantics=("parallel",),
                                   vmem_limit_bytes=vmem_limit)

    if action is None:
        assert eps is not None, "provide eps noise when sampling (action=None)"
        eps_p = jnp.pad(eps.astype(jnp.float32), ((0, b_pad - B), (0, 0)))  # native A width
        slab = pl.pallas_call(
            partial(_ppo_sample_kernel, A),
            out_shape=out_shape, grid=grid,
            in_specs=[bspec(S), bspec(A)] + weight_specs,
            out_specs=out_spec, compiler_params=cparams,
        )(x_p, eps_p, *weight_args)
        slab = slab[:B]
        action_out = slab[:, :A]
    else:
        act = action.astype(jnp.float32)
        act_p = jnp.pad(act, ((0, b_pad - B), (0, 0)))                      # native A width
        slab = pl.pallas_call(
            partial(_ppo_eval_kernel, A),
            out_shape=out_shape, grid=grid,
            in_specs=[bspec(S), bspec(A)] + weight_specs,
            out_specs=out_spec, compiler_params=cparams,
        )(x_p, act_p, *weight_args)
        slab = slab[:B]
        action_out = act

    log_prob = slab[:, A:A + 1]
    value = slab[:, A + 1:A + 2]
    zeros = jnp.zeros((B, 1), jnp.float32)   # compile-time constant, no kernel store
    return action_out, log_prob, zeros, value


def init_params(key, state_size, hidden_units, num_actions,
                weight_dtype=jnp.bfloat16):
    """Deterministic parameter init (shapes match the PyTorch module).

    weight_dtype defaults to bfloat16 (v6e/v7x MXU-native, halves weight HBM
    traffic and VMEM residency); f32 accumulation is kept in-kernel.  Pass
    jnp.float32 for bit-tight comparisons against an f32 reference.
    """
    ks = jax.random.split(key, 8)

    def linear(kw, kb, fan_in, fan_out):
        bound = 1.0 / math.sqrt(fan_in)
        w = jax.random.uniform(kw, (fan_in, fan_out), jnp.float32, -bound, bound)
        b = jax.random.uniform(kb, (1, fan_out), jnp.float32, -bound, bound)
        return w.astype(weight_dtype), b

    w1, b1 = linear(ks[0], ks[1], state_size, hidden_units)
    w2, b2 = linear(ks[2], ks[3], hidden_units, hidden_units)
    wa, ba = linear(ks[4], ks[5], hidden_units, num_actions)
    wc, bc = linear(ks[6], ks[7], hidden_units, 1)
    std = jnp.ones((1, num_actions), jnp.float32)   # nn.Parameter(torch.ones(1, A))
    return dict(w1=w1, b1=b1, w2=w2, b2=b2, wa=wa, ba=ba, wc=wc, bc=bc, std=std)


def _reference(params, x, action, eps):
    """Pure-JAX reference of the same forward for correctness checks."""
    f32 = lambda a: a.astype(jnp.float32)
    h1 = jax.nn.relu(x @ f32(params["w1"]) + params["b1"])
    h2 = jax.nn.relu(h1 @ f32(params["w2"]) + params["b2"])
    mu = h2 @ f32(params["wa"]) + params["ba"]
    v = h2 @ f32(params["wc"]) + params["bc"]
    std = params["std"]
    act = mu + std * eps if action is None else action
    lp = -((act - mu) ** 2) / (2 * std * std) - jnp.log(std) - 0.5 * math.log(2 * math.pi)
    return act, jnp.sum(lp, axis=1, keepdims=True), jnp.zeros((x.shape[0], 1)), v


if __name__ == "__main__":
    B, STATE, HIDDEN, ACTIONS = 8, 16, 32, 4

    key = jax.random.PRNGKey(0)
    k_param, k_x, k_eps = jax.random.split(key, 3)

    # f32 weights for tight reference checks (bf16 path exercised below).
    params = init_params(k_param, STATE, HIDDEN, ACTIONS, weight_dtype=jnp.float32)
    # Exercise a non-trivial (trained) std so the folded log-prob constants are tested.
    params["std"] = jnp.linspace(0.5, 1.5, ACTIONS, dtype=jnp.float32).reshape(1, ACTIONS)

    x = jax.random.normal(k_x, (B, STATE), jnp.float32)
    eps = jax.random.normal(k_eps, (B, ACTIONS), jnp.float32)

    # --- action=None path (sampling via deterministic eps) ---
    action, log_prob, zeros, values = ppo_forward(params, x, action=None, eps=eps)
    jax.block_until_ready((action, log_prob, zeros, values))

    ref = _reference(params, x, None, eps)
    assert action.shape == (B, ACTIONS)
    assert log_prob.shape == (B, 1)
    assert zeros.shape == (B, 1)
    assert values.shape == (B, 1)
    assert jnp.allclose(action, ref[0], atol=1e-5)
    assert jnp.allclose(log_prob, ref[1], atol=1e-5)
    assert jnp.allclose(zeros, 0.0)
    assert jnp.allclose(values, ref[3], atol=1e-5)

    # --- provided-action path ---
    action2, log_prob2, _, values2 = ppo_forward(params, x, action=action)
    jax.block_until_ready((action2, log_prob2, values2))
    assert jnp.allclose(action2, action, atol=1e-6)
    assert jnp.allclose(log_prob2, log_prob, atol=1e-5)
    assert jnp.allclose(values2, values, atol=1e-6)

    # --- ragged batch (exercises batch padding / slicing) ---
    xb, epsb = x[:6], eps[:6]
    a3, lp3, z3, v3 = ppo_forward(params, xb, action=None, eps=epsb)
    jax.block_until_ready((a3, lp3, z3, v3))
    ref3 = _reference(params, xb, None, epsb)
    assert a3.shape == (6, ACTIONS) and lp3.shape == (6, 1) and v3.shape == (6, 1)
    assert jnp.allclose(a3, ref3[0], atol=1e-5)
    assert jnp.allclose(lp3, ref3[1], atol=1e-5)
    assert jnp.allclose(v3, ref3[3], atol=1e-5)

    # --- multi-tile batch (B >= 16 splits the parallel grid into >= 2 tiles) ---
    B2 = 32
    x2 = jax.random.normal(jax.random.PRNGKey(1), (B2, STATE), jnp.float32)
    eps2 = jax.random.normal(jax.random.PRNGKey(2), (B2, ACTIONS), jnp.float32)
    a4, lp4, _, v4 = ppo_forward(params, x2, action=None, eps=eps2)
    jax.block_until_ready((a4, lp4, v4))
    ref4 = _reference(params, x2, None, eps2)
    assert jnp.allclose(a4, ref4[0], atol=1e-5)
    assert jnp.allclose(lp4, ref4[1], atol=1e-5)
    assert jnp.allclose(v4, ref4[3], atol=1e-5)

    # --- bf16-weight path (the v6e/v7x default): loose tolerance vs f32 reference ---
    params_bf = dict(params)
    for k in ("w1", "w2", "wa", "wc"):
        params_bf[k] = params[k].astype(jnp.bfloat16)
    a5, lp5, _, v5 = ppo_forward(params_bf, x, action=None, eps=eps)
    jax.block_until_ready((a5, lp5, v5))
    assert a5.shape == (B, ACTIONS) and lp5.shape == (B, 1) and v5.shape == (B, 1)
    assert jnp.allclose(a5, ref[0], atol=5e-2)
    assert jnp.allclose(lp5, ref[1], atol=5e-2)
    assert jnp.allclose(v5, ref[3], atol=5e-2)

    print("KERNEL_OK")
</pallas_src>

<mosaic_0001>
module attributes {stable_mosaic.version = 11 : i64} {
  func.func @_ppo_sample_kernel(%arg0: i32, %arg1: memref<8x16xf32, #tpu.memory_space<vmem>>, %arg2: memref<8x4xf32, #tpu.memory_space<vmem>>, %arg3: memref<16x32xf32, #tpu.memory_space<vmem>>, %arg4: memref<1x32xf32, #tpu.memory_space<vmem>>, %arg5: memref<32x32xf32, #tpu.memory_space<vmem>>, %arg6: memref<1x32xf32, #tpu.memory_space<vmem>>, %arg7: memref<32x128xf32, #tpu.memory_space<vmem>>, %arg8: memref<1x128xf32, #tpu.memory_space<vmem>>, %arg9: memref<6x128xf32, #tpu.memory_space<vmem>>, %arg10: memref<8x128xf32, #tpu.memory_space<vmem>>) attributes {dimension_semantics = [#tpu.dimension_semantics<parallel>], iteration_bounds = array<i64: 1>, scalar_prefetch = 0 : i64, scratch_operands = 0 : i64, tpu.core_type = #tpu.core_type<tc>, window_params = [{transform_indices = @transform_0, window_bounds = array<i64: 8, 16>}, {transform_indices = @transform_1, window_bounds = array<i64: 8, 4>}, {pipeline_mode = #tpu.pipeline_mode<synchronous>, transform_indices = @transform_2, window_bounds = array<i64: 16, 32>}, {pipeline_mode = #tpu.pipeline_mode<synchronous>, transform_indices = @transform_3, window_bounds = array<i64: 1, 32>}, {pipeline_mode = #tpu.pipeline_mode<synchronous>, transform_indices = @transform_4, window_bounds = array<i64: 32, 32>}, {pipeline_mode = #tpu.pipeline_mode<synchronous>, transform_indices = @transform_5, window_bounds = array<i64: 1, 32>}, {pipeline_mode = #tpu.pipeline_mode<synchronous>, transform_indices = @transform_6, window_bounds = array<i64: 32, 128>}, {pipeline_mode = #tpu.pipeline_mode<synchronous>, transform_indices = @transform_7, window_bounds = array<i64: 1, 128>}, {pipeline_mode = #tpu.pipeline_mode<synchronous>, transform_indices = @transform_8, window_bounds = array<i64: 6, 128>}, {transform_indices = @transform_9, window_bounds = array<i64: 8, 128>}]} {
    %c0 = arith.constant 0 : index
    %c0_0 = arith.constant 0 : index
    %0 = vector.load %arg1[%c0, %c0_0] : memref<8x16xf32, #tpu.memory_space<vmem>>, vector<8x16xf32>
    %c0_1 = arith.constant 0 : index
    %c0_2 = arith.constant 0 : index
    %1 = vector.load %arg3[%c0_1, %c0_2] : memref<16x32xf32, #tpu.memory_space<vmem>>, vector<16x32xf32>
    %cst = arith.constant dense<0.000000e+00> : vector<8x32xf32>
    %2 = tpu.matmul %0, %1, %cst {dimension_numbers = #tpu.dot_dimension_numbers<[1], [0], [0], [1], [0, 0, 1, 1], [], []>} : vector<8x16xf32>, vector<16x32xf32>, vector<8x32xf32> -> vector<8x32xf32>
    %c0_3 = arith.constant 0 : index
    %c0_4 = arith.constant 0 : index
    %3 = vector.load %arg4[%c0_3, %c0_4] : memref<1x32xf32, #tpu.memory_space<vmem>>, vector<1x32xf32>
    %4 = vector.broadcast %3 : vector<1x32xf32> to vector<8x32xf32>
    %5 = arith.addf %2, %4 : vector<8x32xf32>
    %cst_5 = arith.constant 0.000000e+00 : f32
    %6 = vector.broadcast %cst_5 : f32 to vector<8x32xf32>
    %7 = arith.maximumf %5, %6 : vector<8x32xf32>
    %c0_6 = arith.constant 0 : index
    %c0_7 = arith.constant 0 : index
    %8 = vector.load %arg5[%c0_6, %c0_7] : memref<32x32xf32, #tpu.memory_space<vmem>>, vector<32x32xf32>
    %cst_8 = arith.constant dense<0.000000e+00> : vector<8x32xf32>
    %9 = tpu.matmul %7, %8, %cst_8 {dimension_numbers = #tpu.dot_dimension_numbers<[1], [0], [0], [1], [0, 0, 1, 1], [], []>} : vector<8x32xf32>, vector<32x32xf32>, vector<8x32xf32> -> vector<8x32xf32>
    %c0_9 = arith.constant 0 : index
    %c0_10 = arith.constant 0 : index
    %10 = vector.load %arg6[%c0_9, %c0_10] : memref<1x32xf32, #tpu.memory_space<vmem>>, vector<1x32xf32>
    %11 = vector.broadcast %10 : vector<1x32xf32> to vector<8x32xf32>
    %12 = arith.addf %9, %11 : vector<8x32xf32>
    %cst_11 = arith.constant 0.000000e+00 : f32
    %13 = vector.broadcast %cst_11 : f32 to vector<8x32xf32>
    %14 = arith.maximumf %12, %13 : vector<8x32xf32>
    %c0_12 = arith.constant 0 : index
    %c0_13 = arith.constant 0 : index
    %15 = vector.load %arg7[%c0_12, %c0_13] : memref<32x128xf32, #tpu.memory_space<vmem>>, vector<32x128xf32>
    %cst_14 = arith.constant dense<0.000000e+00> : vector<8x128xf32>
    %16 = tpu.matmul %14, %15, %cst_14 {dimension_numbers = #tpu.dot_dimension_numbers<[1], [0], [0], [1], [0, 0, 1, 1], [], []>} : vector<8x32xf32>, vector<32x128xf32>, vector<8x128xf32> -> vector<8x128xf32>
    %c0_15 = arith.constant 0 : index
    %c0_16 = arith.constant 0 : index
    %17 = vector.load %arg8[%c0_15, %c0_16] : memref<1x128xf32, #tpu.memory_space<vmem>>, vector<1x128xf32>
    %18 = vector.broadcast %17 : vector<1x128xf32> to vector<8x128xf32>
    %19 = arith.addf %16, %18 : vector<8x128xf32>
    %c0_17 = arith.constant 0 : index
    %c0_18 = arith.constant 0 : index
    %20 = vector.load %arg9[%c0_17, %c0_18] : memref<6x128xf32, #tpu.memory_space<vmem>>, vector<6x128xf32>
    %21 = vector.extract_strided_slice %20 {offsets = [0, 0], sizes = [4, 128], strides = [1, 1]} : vector<6x128xf32> to vector<4x128xf32>
    %22 = vector.extract_strided_slice %20 {offsets = [4, 0], sizes = [1, 128], strides = [1, 1]} : vector<6x128xf32> to vector<1x128xf32>
    %c0_19 = arith.constant 0 : index
    %c0_20 = arith.constant 0 : index
    %23 = vector.load %arg2[%c0_19, %c0_20] : memref<8x4xf32, #tpu.memory_space<vmem>>, vector<8x4xf32>
    %cst_21 = arith.constant dense<0.000000e+00> : vector<8x128xf32>
    %24 = tpu.matmul %23, %21, %cst_21 {dimension_numbers = #tpu.dot_dimension_numbers<[1], [0], [0], [1], [0, 0, 1, 1], [], []>} : vector<8x4xf32>, vector<4x128xf32>, vector<8x128xf32> -> vector<8x128xf32>
    %25 = arith.mulf %23, %23 : vector<8x4xf32>
    %cst_22 = arith.constant dense<0.000000e+00> : vector<8xf32>
    %26 = vector.multi_reduction <add>, %25, %cst_22 [1] : vector<8x4xf32> to vector<8xf32>
    %27 = vector.shape_cast %26 : vector<8xf32> to vector<8x1xf32>
    %cst_23 = arith.constant -5.000000e-01 : f32
    %28 = vector.broadcast %cst_23 : f32 to vector<8x1xf32>
    %29 = arith.mulf %28, %27 : vector<8x1xf32>
    %30 = arith.addf %19, %24 : vector<8x128xf32>
    %31 = vector.broadcast %29 : vector<8x1xf32> to vector<8x128xf32>
    %32 = vector.broadcast %22 : vector<1x128xf32> to vector<8x128xf32>
    %33 = arith.mulf %31, %32 : vector<8x128xf32>
    %34 = arith.addf %30, %33 : vector<8x128xf32>
    %c0_24 = arith.constant 0 : index
    %c0_25 = arith.constant 0 : index
    %35 = vector.load %arg10[%c0_24, %c0_25] : memref<8x128xf32, #tpu.memory_space<vmem>>, vector<8x128xf32>
    tpu.vector_store %arg10[%c0_24, %c0_25], %34 {strides = array<i32>} : memref<8x128xf32, #tpu.memory_space<vmem>>, vector<8x128xf32>,
    return
  }
  func.func @transform_0(%arg0: i32) -> (i32, i32) {
    %c0_i32 = arith.constant 0 : i32
    %c0_i32_0 = arith.constant 0 : i32
    return %arg0, %c0_i32 : i32, i32
  }
  func.func @transform_1(%arg0: i32) -> (i32, i32) {
    %c0_i32 = arith.constant 0 : i32
    %c0_i32_0 = arith.constant 0 : i32
    return %arg0, %c0_i32 : i32, i32
  }
  func.func @transform_2(%arg0: i32) -> (i32, i32) {
    %c0_i32 = arith.constant 0 : i32
    %c0_i32_0 = arith.constant 0 : i32
    %c0_i32_1 = arith.constant 0 : i32
    return %c0_i32, %c0_i32_0 : i32, i32
  }
  func.func @transform_3(%arg0: i32) -> (i32, i32) {
    %c0_i32 = arith.constant 0 : i32
    %c0_i32_0 = arith.constant 0 : i32
    %c0_i32_1 = arith.constant 0 : i32
    return %c0_i32, %c0_i32_0 : i32, i32
  }
  func.func @transform_4(%arg0: i32) -> (i32, i32) {
    %c0_i32 = arith.constant 0 : i32
    %c0_i32_0 = arith.constant 0 : i32
    %c0_i32_1 = arith.constant 0 : i32
    return %c0_i32, %c0_i32_0 : i32, i32
  }
  func.func @transform_5(%arg0: i32) -> (i32, i32) {
    %c0_i32 = arith.constant 0 : i32
    %c0_i32_0 = arith.constant 0 : i32
    %c0_i32_1 = arith.constant 0 : i32
    return %c0_i32, %c0_i32_0 : i32, i32
  }
  func.func @transform_6(%arg0: i32) -> (i32, i32) {
    %c0_i32 = arith.constant 0 : i32
    %c0_i32_0 = arith.constant 0 : i32
    %c0_i32_1 = arith.constant 0 : i32
    return %c0_i32, %c0_i32_0 : i32, i32
  }
  func.func @transform_7(%arg0: i32) -> (i32, i32) {
    %c0_i32 = arith.constant 0 : i32
    %c0_i32_0 = arith.constant 0 : i32
    %c0_i32_1 = arith.constant 0 : i32
    return %c0_i32, %c0_i32_0 : i32, i32
  }
  func.func @transform_8(%arg0: i32) -> (i32, i32) {
    %c0_i32 = arith.constant 0 : i32
    %c0_i32_0 = arith.constant 0 : i32
    %c0_i32_1 = arith.constant 0 : i32
    return %c0_i32, %c0_i32_0 : i32, i32
  }
  func.func @transform_9(%arg0: i32) -> (i32, i32) {
    %c0_i32 = arith.constant 0 : i32
    %c0_i32_0 = arith.constant 0 : i32
    return %arg0, %c0_i32 : i32, i32
  }
}

</mosaic_0001>

<llo_original>
// kernel: tpu_custom_call.1
$region0: #{tpu_custom_call.1}
  #allocation0 [shape = 'u32[]', space=smem, size = 0x4, offset = 0x4, fixed_abs, tag = 'smem constant byte address 0x4 - core index']
  #allocation1 [shape = 'u32[144,128]{1,0:T(1,128)}', space=vmem, size = 0x12000, scoped, tag = 'internal scratch']
  %s0 = inlined_call_operand.hbm [shape: f32[8,16], index: 0, kind: input, shape index: {}]
  %s1 = inlined_call_operand.vmem [shape: f32[8,4], index: 1, kind: input, shape index: {}]
  %s2 = inlined_call_operand.hbm [shape: f32[16,32], index: 2, kind: input, shape index: {}]
  %s3 = inlined_call_operand.vmem [shape: f32[1,32], index: 3, kind: input, shape index: {}]
  %s4 = inlined_call_operand.hbm [shape: f32[32,32], index: 4, kind: input, shape index: {}]
  %s5 = inlined_call_operand.vmem [shape: f32[1,32], index: 5, kind: input, shape index: {}]
  %s6 = inlined_call_operand.vmem [shape: f32[32,128], index: 6, kind: input, shape index: {}]
  %s7 = inlined_call_operand.hbm [shape: f32[1,128], index: 7, kind: input, shape index: {}]
  %s8 = inlined_call_operand.vmem [shape: f32[6,128], index: 8, kind: input, shape index: {}]
  %s9 = inlined_call_operand.hbm [shape: f32[8,128], index: 9, kind: output, shape index: {}]
  %s10 = sld [smem:[#allocation0]]
  $region62: #{tpu_custom_call.1} parent=0
    _
  %s12 = ssub.s32 1, %s10
  %s13 = scalar_select 0, %s12, %s10
  $region1: #{tpu_custom_call.1} parent=0
    #allocation2 [shape = 'u8[4096]{0}', space=vmem, size = 0x1000, scoped, tag = 'input window, operand 0, single buffered']
    #allocation3 [shape = 's32[1]{0}', space=sflag, size = 0x4, scoped, tag = 'scoped memory for tpu_custom_call.1']
    #allocation4 [shape = 's32[1]{0}', space=sflag, size = 0x4, scoped, tag = 'scoped memory for tpu_custom_call.1']
    #allocation5 [shape = 'u8[8192]{0}', space=vmem, size = 0x2000, scoped, tag = 'input window, operand 2, single buffered']
    #allocation6 [shape = 's32[1]{0}', space=sflag, size = 0x4, scoped, tag = 'scoped memory for tpu_custom_call.1']
    #allocation7 [shape = 'u8[16384]{0}', space=vmem, size = 0x4000, scoped, tag = 'input window, operand 4, single buffered']
    #allocation8 [shape = 'u8[512]{0}', space=vmem, size = 0x400, scoped, tag = 'input window, operand 7, single buffered']
    #allocation9 [shape = 's32[1]{0}', space=sflag, size = 0x4, scoped, tag = 'scoped memory for tpu_custom_call.1']
    #allocation10 [shape = 'u8[4096]{0}', space=vmem, size = 0x1000, scoped, tag = 'output window, operand 0, single buffered']
    %14 = vsyncpa [#allocation3], 0
    %15 = vsyncpa [#allocation6], 0
    %16 = vsyncpa [#allocation9], 0
    %17 = vsyncpa [#allocation4], 0
    // Predicated region
    $region2: #{tpu_custom_call.1} parent=1 // pred_check
      _
    $region3: #{tpu_custom_call.1} parent=1 // pred_check_branch
      %19 = sbr.rel (0) target = $region5
    $region4: #{tpu_custom_call.1} parent=1 // pred_region
      %s21 = ssub.s32 128, 128
      %22 = vsyncadd [#allocation3], %s21
      %s24 = sshll.u32 [#allocation2], 4
      %s25 = int_to_ptr.vmem [resolvable:$true] %s24
      %27 = dma.hbm_to_vmem [thread:$0]  %s0, 128, %s25, [#allocation3]
    $region5: #{tpu_custom_call.1} parent=1 // pred_fallthru
      _
    // Predicated region
    $region6: #{tpu_custom_call.1} parent=1 // pred_check
      _
    $region7: #{tpu_custom_call.1} parent=1 // pred_check_branch
      %29 = sbr.rel (0) target = $region9
    $region8: #{tpu_custom_call.1} parent=1 // pred_region
      _
    $region9: #{tpu_custom_call.1} parent=1 // pred_fallthru
      _
    // Predicated region
    $region10: #{tpu_custom_call.1} parent=1 // pred_check
      _
    $region11: #{tpu_custom_call.1} parent=1 // pred_check_branch
      %31 = sbr.rel (0) target = $region13
    $region12: #{tpu_custom_call.1} parent=1 // pred_region
      %s33 = ssub.s32 256, 256
      %34 = vsyncadd [#allocation6], %s33
      %s35 = sshll.u32 [#allocation5], 4
      %s36 = int_to_ptr.vmem [resolvable:$true] %s35
      %41 = dma.hbm_to_vmem [thread:$0]  %s2, 256, %s36, [#allocation6], 128, 128, 8
    $region13: #{tpu_custom_call.1} parent=1 // pred_fallthru
      _
    // Predicated region
    $region14: #{tpu_custom_call.1} parent=1 // pred_check
      _
    $region15: #{tpu_custom_call.1} parent=1 // pred_check_branch
      %43 = sbr.rel (0) target = $region17
    $region16: #{tpu_custom_call.1} parent=1 // pred_region
      _
    $region17: #{tpu_custom_call.1} parent=1 // pred_fallthru
      _
    // Predicated region
    $region18: #{tpu_custom_call.1} parent=1 // pred_check
      _
    $region19: #{tpu_custom_call.1} parent=1 // pred_check_branch
      %45 = sbr.rel (0) target = $region21
    $region20: #{tpu_custom_call.1} parent=1 // pred_region
      %s47 = ssub.s32 512, 512
      %48 = vsyncadd [#allocation6], %s47
      %s49 = sshll.u32 [#allocation7], 4
      %s50 = int_to_ptr.vmem [resolvable:$true] %s49
      %55 = dma.hbm_to_vmem [thread:$0]  %s4, 512, %s50, [#allocation6], 128, 128, 8
    $region21: #{tpu_custom_call.1} parent=1 // pred_fallthru
      _
    // Predicated region
    $region22: #{tpu_custom_call.1} parent=1 // pred_check
      _
    $region23: #{tpu_custom_call.1} parent=1 // pred_check_branch
      %57 = sbr.rel (0) target = $region25
    $region24: #{tpu_custom_call.1} parent=1 // pred_region
      _
    $region25: #{tpu_custom_call.1} parent=1 // pred_fallthru
      _
    // Predicated region
    $region26: #{tpu_custom_call.1} parent=1 // pred_check
      _
    $region27: #{tpu_custom_call.1} parent=1 // pred_check_branch
      %59 = sbr.rel (0) target = $region29
    $region28: #{tpu_custom_call.1} parent=1 // pred_region
      _
    $region29: #{tpu_custom_call.1} parent=1 // pred_fallthru
      _
    // Predicated region
    $region30: #{tpu_custom_call.1} parent=1 // pred_check
      _
    $region31: #{tpu_custom_call.1} parent=1 // pred_check_branch
      %61 = sbr.rel (0) target = $region33
    $region32: #{tpu_custom_call.1} parent=1 // pred_region
      %s63 = ssub.s32 16, 16
      %64 = vsyncadd [#allocation9], %s63
      %s66 = sshll.u32 [#allocation8], 4
      %s67 = int_to_ptr.vmem [resolvable:$true] %s66
      %69 = dma.hbm_to_vmem [thread:$0]  %s7, 16, %s67, [#allocation9]
    $region33: #{tpu_custom_call.1} parent=1 // pred_fallthru
      _
    // Predicated region
    $region34: #{tpu_custom_call.1} parent=1 // pred_check
      _
    $region35: #{tpu_custom_call.1} parent=1 // pred_check_branch
      %71 = sbr.rel (0) target = $region37
    $region36: #{tpu_custom_call.1} parent=1 // pred_region
      _
    $region37: #{tpu_custom_call.1} parent=1 // pred_fallthru
      _
    // Predicated region
    $region38: #{tpu_custom_call.1} parent=1 // pred_check
      _
    $region39: #{tpu_custom_call.1} parent=1 // pred_check_branch
      %73 = sbr.rel (0) target = $region41
    $region40: #{tpu_custom_call.1} parent=1 // pred_region
      %74 = dma.done [#allocation3], 128
    $region41: #{tpu_custom_call.1} parent=1 // pred_fallthru
      _
    // Predicated region
    $region42: #{tpu_custom_call.1} parent=1 // pred_check
      _
    $region43: #{tpu_custom_call.1} parent=1 // pred_check_branch
      %76 = sbr.rel (0) target = $region45
    $region44: #{tpu_custom_call.1} parent=1 // pred_region
      %77 = dma.done [#allocation6], 256
    $region45: #{tpu_custom_call.1} parent=1 // pred_fallthru
      _
    // Predicated region
    $region46: #{tpu_custom_call.1} parent=1 // pred_check
      _
    $region47: #{tpu_custom_call.1} parent=1 // pred_check_branch
      %79 = sbr.rel (0) target = $region49
    $region48: #{tpu_custom_call.1} parent=1 // pred_region
      %80 = dma.done [#allocation6], 512
    $region49: #{tpu_custom_call.1} parent=1 // pred_fallthru
      _
    // Predicated region
    $region50: #{tpu_custom_call.1} parent=1 // pred_check
      _
    $region51: #{tpu_custom_call.1} parent=1 // pred_check_branch
      %82 = sbr.rel (0) target = $region53
    $region52: #{tpu_custom_call.1} parent=1 // pred_region
      %83 = dma.done [#allocation9], 16
    $region53: #{tpu_custom_call.1} parent=1 // pred_fallthru
      _
    %v84 = vld [vmem:[#allocation2] sm:$0xff]
    %v85 = vld [vmem:[#allocation5] sm:$0xff]
    %v86 = vld [vmem:[#allocation5 + $0x8] sm:$0xff]
    %v87 = vld [vmem:[%s3] sm:$0x1]
    %v89 = vlaneseq
    %v90 = vshrl.u32 %v89, 7
    %v91 = vsub.s32 0, %v90
    %v92 = vrot.slane %v87, %v91
    %vm94 = vcmask 130048
    %v96 = vsel %vm94, %v84, 0
    %98 = vmatprep.subr.mxu0 0.0
    %99 = vmatpush1.msra.mxu0 %v85
    %100 = vmatprep.subr.mxu0 0.0
    %101 = vmatpush1.msra.mxu0 %v86
    %102 = vmatprep.subr.mxu0 0.0
    %103 = vmatpush1.msra.mxu0 0.0
    %104 = vmatprep.subr.mxu0 0.0
    %105 = vmatpush1.msra.mxu0 0.0
    %106 = vmatprep.subr.mxu0 0.0
    %107 = vmatpush1.msra.mxu0 0.0
    %108 = vmatprep.subr.mxu0 0.0
    %109 = vmatpush1.msra.mxu0 0.0
    %110 = vmatprep.subr.mxu0 0.0
    %111 = vmatpush1.msra.mxu0 0.0
    %112 = vmatprep.subr.mxu0 0.0
    %113 = vmatpush1.msra.mxu0 0.0
    %114 = vmatprep.subr.mxu0 0.0
    %115 = vmatpush1.msra.mxu0 0.0
    %116 = vmatprep.subr.mxu0 0.0
    %117 = vmatpush1.msra.mxu0 0.0
    %118 = vmatprep.subr.mxu0 0.0
    %119 = vmatpush1.msra.mxu0 0.0
    %120 = vmatprep.subr.mxu0 0.0
    %121 = vmatpush1.msra.mxu0 0.0
    %122 = vmatprep.subr.mxu0 0.0
    %123 = vmatpush1.msra.mxu0 0.0
    %124 = vmatprep.subr.mxu0 0.0
    %125 = vmatpush1.msra.mxu0 0.0
    %126 = vmatprep.subr.mxu0 0.0
    %127 = vmatpush1.msra.mxu0 0.0
    %128 = vmatprep.subr.mxu0 0.0
    %129 = vmatpush1.msra.mxu0 0.0
    %130 = vmatprep.subr.mxu0 0.0
    %131 = vmatpush1.msra.mxu0 0.0
    %132 = vmatprep.subr.mxu0 0.0
    %133 = vmatpush1.msra.mxu0 0.0
    %134 = vmatprep.subr.mxu0 0.0
    %135 = vmatpush1.msra.mxu0 0.0
    %136 = vmatprep.subr.mxu0 0.0
    %137 = vmatpush1.msra.mxu0 0.0
    %138 = vmatprep.subr.mxu0 0.0
    %139 = vmatpush1.msra.mxu0 0.0
    %140 = vmatprep.subr.mxu0 0.0
    %141 = vmatpush1.msra.mxu0 0.0
    %142 = vmatprep.subr.mxu0 0.0
    %143 = vmatpush1.msra.mxu0 0.0
    %144 = vmatprep.subr.mxu0 0.0
    %145 = vmatpush1.msra.mxu0 0.0
    %146 = vmatprep.subr.mxu0 0.0
    %147 = vmatpush1.msra.mxu0 0.0
    %148 = vmatprep.subr.mxu0 0.0
    %149 = vmatpush1.msra.mxu0 0.0
    %150 = vmatprep.subr.mxu0 0.0
    %151 = vmatpush1.msra.mxu0 0.0
    %152 = vmatprep.subr.mxu0 0.0
    %153 = vmatpush1.msra.mxu0 0.0
    %154 = vmatprep.subr.mxu0 0.0
    %155 = vmatpush1.msra.mxu0 0.0
    %156 = vmatprep.subr.mxu0 0.0
    %157 = vmatpush1.msra.mxu0 0.0
    %158 = vmatprep.subr.mxu0 0.0
    %159 = vmatpush1.msra.mxu0 0.0
    %160 = vmatprep.subr.mxu0 0.0
    %161 = vmatpush1.msra.mxu0 0.0
    %162 = vmatprep.mubr.f32.mxu0 0.0
    %163 = vmatmul.mubr.f32.gmra.mrb[0].mxu0 %v96
    %v164 = vpop.f32.mrb[0].mxu0
    %v165 = vadd.f32 %v92, %v164
    %v166 = vpop.f32.mrb[0].mxu0
    %167 = vdwg.mxu0
    %v168 = vmax.f32 %v165, 0.0
    %v169 = vld [vmem:[#allocation7] sm:$0xff]
    %v170 = vld [vmem:[#allocation7 + $0x8] sm:$0xff]
    %v171 = vld [vmem:[#allocation7 + $0x10] sm:$0xff]
    %v172 = vld [vmem:[#allocation7 + $0x18] sm:$0xff]
    %v173 = vld [vmem:[%s5] sm:$0x1]
    %v175 = vlaneseq
    %v176 = vshrl.u32 %v175, 7
    %v177 = vsub.s32 0, %v176
    %v178 = vrot.slane %v173, %v177
    %vm180 = vcmask 261120
    %v182 = vsel %vm180, %v168, 0
    %184 = vmatprep.subr.mxu0 0.0
    %185 = vmatpush1.msra.mxu0 %v169
    %186 = vmatprep.subr.mxu0 0.0
    %187 = vmatpush1.msra.mxu0 %v170
    %188 = vmatprep.subr.mxu0 0.0
    %189 = vmatpush1.msra.mxu0 %v171
    %190 = vmatprep.subr.mxu0 0.0
    %191 = vmatpush1.msra.mxu0 %v172
    %192 = vmatprep.subr.mxu0 0.0
    %193 = vmatpush1.msra.mxu0 0.0
    %194 = vmatprep.subr.mxu0 0.0
    %195 = vmatpush1.msra.mxu0 0.0
    %196 = vmatprep.subr.mxu0 0.0
    %197 = vmatpush1.msra.mxu0 0.0
    %198 = vmatprep.subr.mxu0 0.0
    %199 = vmatpush1.msra.mxu0 0.0
    %200 = vmatprep.subr.mxu0 0.0
    %201 = vmatpush1.msra.mxu0 0.0
    %202 = vmatprep.subr.mxu0 0.0
    %203 = vmatpush1.msra.mxu0 0.0
    %204 = vmatprep.subr.mxu0 0.0
    %205 = vmatpush1.msra.mxu0 0.0
    %206 = vmatprep.subr.mxu0 0.0
    %207 = vmatpush1.msra.mxu0 0.0
    %208 = vmatprep.subr.mxu0 0.0
    %209 = vmatpush1.msra.mxu0 0.0
    %210 = vmatprep.subr.mxu0 0.0
    %211 = vmatpush1.msra.mxu0 0.0
    %212 = vmatprep.subr.mxu0 0.0
    %213 = vmatpush1.msra.mxu0 0.0
    %214 = vmatprep.subr.mxu0 0.0
    %215 = vmatpush1.msra.mxu0 0.0
    %216 = vmatprep.subr.mxu0 0.0
    %217 = vmatpush1.msra.mxu0 0.0
    %218 = vmatprep.subr.mxu0 0.0
    %219 = vmatpush1.msra.mxu0 0.0
    %220 = vmatprep.subr.mxu0 0.0
    %221 = vmatpush1.msra.mxu0 0.0
    %222 = vmatprep.subr.mxu0 0.0
    %223 = vmatpush1.msra.mxu0 0.0
    %224 = vmatprep.subr.mxu0 0.0
    %225 = vmatpush1.msra.mxu0 0.0
    %226 = vmatprep.subr.mxu0 0.0
    %227 = vmatpush1.msra.mxu0 0.0
    %228 = vmatprep.subr.mxu0 0.0
    %229 = vmatpush1.msra.mxu0 0.0
    %230 = vmatprep.subr.mxu0 0.0
    %231 = vmatpush1.msra.mxu0 0.0
    %232 = vmatprep.subr.mxu0 0.0
    %233 = vmatpush1.msra.mxu0 0.0
    %234 = vmatprep.subr.mxu0 0.0
    %235 = vmatpush1.msra.mxu0 0.0
    %236 = vmatprep.subr.mxu0 0.0
    %237 = vmatpush1.msra.mxu0 0.0
    %238 = vmatprep.subr.mxu0 0.0
    %239 = vmatpush1.msra.mxu0 0.0
    %240 = vmatprep.subr.mxu0 0.0
    %241 = vmatpush1.msra.mxu0 0.0
    %242 = vmatprep.subr.mxu0 0.0
    %243 = vmatpush1.msra.mxu0 0.0
    %244 = vmatprep.subr.mxu0 0.0
    %245 = vmatpush1.msra.mxu0 0.0
    %246 = vmatprep.subr.mxu0 0.0
    %247 = vmatpush1.msra.mxu0 0.0
    %248 = vmatprep.mubr.f32.mxu0 0.0
    %249 = vmatmul.mubr.f32.gmra.mrb[0].mxu0 %v182
    %v250 = vpop.f32.mrb[0].mxu0
    %v251 = vadd.f32 %v178, %v250
    %v252 = vpop.f32.mrb[0].mxu0
    %253 = vdwg.mxu0
    %v254 = vmax.f32 %v251, 0.0
    %v255 = vld [vmem:[%s6] sm:$0xff]
    %v256 = vld [vmem:[%s6 + $0x8] sm:$0xff]
    %v257 = vld [vmem:[%s6 + $0x10] sm:$0xff]
    %v258 = vld [vmem:[%s6 + $0x18] sm:$0xff]
    %v259 = vld [vmem:[#allocation8] sm:$0x1]
    %v261 = vlaneseq
    %v262 = vshrl.u32 %v261, 7
    %v263 = vsub.s32 0, %v262
    %v264 = vrot.slane %v259, %v263
    %v267 = vsel %vm180, %v254, 0
    %269 = vmatprep.subr.mxu0 0.0
    %270 = vmatpush1.msra.mxu0 %v255
    %271 = vmatprep.subr.mxu0 0.0
    %272 = vmatpush1.msra.mxu0 %v256
    %273 = vmatprep.subr.mxu0 0.0
    %274 = vmatpush1.msra.mxu0 %v257
    %275 = vmatprep.subr.mxu0 0.0
    %276 = vmatpush1.msra.mxu0 %v258
    %277 = vmatprep.subr.mxu0 0.0
    %278 = vmatpush1.msra.mxu0 0.0
    %279 = vmatprep.subr.mxu0 0.0
    %280 = vmatpush1.msra.mxu0 0.0
    %281 = vmatprep.subr.mxu0 0.0
    %282 = vmatpush1.msra.mxu0 0.0
    %283 = vmatprep.subr.mxu0 0.0
    %284 = vmatpush1.msra.mxu0 0.0
    %285 = vmatprep.subr.mxu0 0.0
    %286 = vmatpush1.msra.mxu0 0.0
    %287 = vmatprep.subr.mxu0 0.0
    %288 = vmatpush1.msra.mxu0 0.0
    %289 = vmatprep.subr.mxu0 0.0
    %290 = vmatpush1.msra.mxu0 0.0
    %291 = vmatprep.subr.mxu0 0.0
    %292 = vmatpush1.msra.mxu0 0.0
    %293 = vmatprep.subr.mxu0 0.0
    %294 = vmatpush1.msra.mxu0 0.0
    %295 = vmatprep.subr.mxu0 0.0
    %296 = vmatpush1.msra.mxu0 0.0
    %297 = vmatprep.subr.mxu0 0.0
    %298 = vmatpush1.msra.mxu0 0.0
    %299 = vmatprep.subr.mxu0 0.0
    %300 = vmatpush1.msra.mxu0 0.0
    %301 = vmatprep.subr.mxu0 0.0
    %302 = vmatpush1.msra.mxu0 0.0
    %303 = vmatprep.subr.mxu0 0.0
    %304 = vmatpush1.msra.mxu0 0.0
    %305 = vmatprep.subr.mxu0 0.0
    %306 = vmatpush1.msra.mxu0 0.0
    %307 = vmatprep.subr.mxu0 0.0
    %308 = vmatpush1.msra.mxu0 0.0
    %309 = vmatprep.subr.mxu0 0.0
    %310 = vmatpush1.msra.mxu0 0.0
    %311 = vmatprep.subr.mxu0 0.0
    %312 = vmatpush1.msra.mxu0 0.0
    %313 = vmatprep.subr.mxu0 0.0
    %314 = vmatpush1.msra.mxu0 0.0
    %315 = vmatprep.subr.mxu0 0.0
    %316 = vmatpush1.msra.mxu0 0.0
    %317 = vmatprep.subr.mxu0 0.0
    %318 = vmatpush1.msra.mxu0 0.0
    %319 = vmatprep.subr.mxu0 0.0
    %320 = vmatpush1.msra.mxu0 0.0
    %321 = vmatprep.subr.mxu0 0.0
    %322 = vmatpush1.msra.mxu0 0.0
    %323 = vmatprep.subr.mxu0 0.0
    %324 = vmatpush1.msra.mxu0 0.0
    %325 = vmatprep.subr.mxu0 0.0
    %326 = vmatpush1.msra.mxu0 0.0
    %327 = vmatprep.subr.mxu0 0.0
    %328 = vmatpush1.msra.mxu0 0.0
    %329 = vmatprep.subr.mxu0 0.0
    %330 = vmatpush1.msra.mxu0 0.0
    %331 = vmatprep.subr.mxu0 0.0
    %332 = vmatpush1.msra.mxu0 0.0
    %333 = vmatprep.mubr.f32.mxu0 0.0
    %334 = vmatmul.mubr.f32.gmra.mrb[0].mxu0 %v267
    %v335 = vpop.f32.mrb[0].mxu0
    %v336 = vadd.f32 %v264, %v335
    %v337 = vpop.f32.mrb[0].mxu0
    %338 = vdwg.mxu0
    %v339 = vld [vmem:[%s8] sm:$0x3f]
    %v340 = vld [vmem:[%s1] sm:$0xff]
    %vm341 = vcmask 31744
    %v343 = vsel %vm341, %v340, 0
    %vm345 = vcmask 1043456
    %v347 = vsel %vm345, %v339, 0
    %349 = vmatprep.subr.mxu0 0.0
    %350 = vmatpush1.msra.mxu0 %v347
    %351 = vmatprep.subr.mxu0 0.0
    %352 = vmatpush1.msra.mxu0 0.0
    %353 = vmatprep.subr.mxu0 0.0
    %354 = vmatpush1.msra.mxu0 0.0
    %355 = vmatprep.subr.mxu0 0.0
    %356 = vmatpush1.msra.mxu0 0.0
    %357 = vmatprep.subr.mxu0 0.0
    %358 = vmatpush1.msra.mxu0 0.0
    %359 = vmatprep.subr.mxu0 0.0
    %360 = vmatpush1.msra.mxu0 0.0
    %361 = vmatprep.subr.mxu0 0.0
    %362 = vmatpush1.msra.mxu0 0.0
    %363 = vmatprep.subr.mxu0 0.0
    %364 = vmatpush1.msra.mxu0 0.0
    %365 = vmatprep.subr.mxu0 0.0
    %366 = vmatpush1.msra.mxu0 0.0
    %367 = vmatprep.subr.mxu0 0.0
    %368 = vmatpush1.msra.mxu0 0.0
    %369 = vmatprep.subr.mxu0 0.0
    %370 = vmatpush1.msra.mxu0 0.0
    %371 = vmatprep.subr.mxu0 0.0
    %372 = vmatpush1.msra.mxu0 0.0
    %373 = vmatprep.subr.mxu0 0.0
    %374 = vmatpush1.msra.mxu0 0.0
    %375 = vmatprep.subr.mxu0 0.0
    %376 = vmatpush1.msra.mxu0 0.0
    %377 = vmatprep.subr.mxu0 0.0
    %378 = vmatpush1.msra.mxu0 0.0
    %379 = vmatprep.subr.mxu0 0.0
    %380 = vmatpush1.msra.mxu0 0.0
    %381 = vmatprep.subr.mxu0 0.0
    %382 = vmatpush1.msra.mxu0 0.0
    %383 = vmatprep.subr.mxu0 0.0
    %384 = vmatpush1.msra.mxu0 0.0
    %385 = vmatprep.subr.mxu0 0.0
    %386 = vmatpush1.msra.mxu0 0.0
    %387 = vmatprep.subr.mxu0 0.0
    %388 = vmatpush1.msra.mxu0 0.0
    %389 = vmatprep.subr.mxu0 0.0
    %390 = vmatpush1.msra.mxu0 0.0
    %391 = vmatprep.subr.mxu0 0.0
    %392 = vmatpush1.msra.mxu0 0.0
    %393 = vmatprep.subr.mxu0 0.0
    %394 = vmatpush1.msra.mxu0 0.0
    %395 = vmatprep.subr.mxu0 0.0
    %396 = vmatpush1.msra.mxu0 0.0
    %397 = vmatprep.subr.mxu0 0.0
    %398 = vmatpush1.msra.mxu0 0.0
    %399 = vmatprep.subr.mxu0 0.0
    %400 = vmatpush1.msra.mxu0 0.0
    %401 = vmatprep.subr.mxu0 0.0
    %402 = vmatpush1.msra.mxu0 0.0
    %403 = vmatprep.subr.mxu0 0.0
    %404 = vmatpush1.msra.mxu0 0.0
    %405 = vmatprep.subr.mxu0 0.0
    %406 = vmatpush1.msra.mxu0 0.0
    %407 = vmatprep.subr.mxu0 0.0
    %408 = vmatpush1.msra.mxu0 0.0
    %409 = vmatprep.subr.mxu0 0.0
    %410 = vmatpush1.msra.mxu0 0.0
    %411 = vmatprep.subr.mxu0 0.0
    %412 = vmatpush1.msra.mxu0 0.0
    %413 = vmatprep.mubr.f32.mxu0 0.0
    %414 = vmatmul.mubr.f32.gmra.mrb[0].mxu0 %v343
    %v415 = vpop.f32.mrb[0].mxu0
    %v416 = vadd.f32 0.0, %v415
    %v417 = vpop.f32.mrb[0].mxu0
    %418 = vdwg.mxu0
    %v419 = vmul.f32 %v340, %v340
    %v420 = vsel %vm341, %v419, 0.0
    %421 = vadd.xlane.f32.xlu0 %v420
    %v422 = vpop.xlane.xlu0 %421
    %v423 = vmul.f32 %v422, -0.5
    %v424 = vadd.f32 %v336, %v416
    %v425 = vlaneseq
    %v426 = vshrl.u32 %v425, 7
    %v427 = vsub.s32 4, %v426
    %v428 = vrot.slane %v339, %v427
    %v429 = vmul.f32 %v423, %v428
    %v430 = vadd.f32 %v424, %v429
    %431 = vst [vmem:[#allocation10] sm:$0xff] %v430
    // Predicated region
    $region54: #{tpu_custom_call.1} parent=1 // pred_check
      _
    $region55: #{tpu_custom_call.1} parent=1 // pred_check_branch
      %433 = sbr.rel (0) target = $region57
    $region56: #{tpu_custom_call.1} parent=1 // pred_region
      %s435 = ssub.s32 128, 128
      %436 = vsyncadd [#allocation4], %s435
      %s438 = sshll.u32 [#allocation10], 4
      %s439 = int_to_ptr.vmem [resolvable:$true] %s438
      %441 = dma.vmem_to_hbm [thread:$0]  %s439, 128, %s9, [#allocation4]
    $region57: #{tpu_custom_call.1} parent=1 // pred_fallthru
      _
    // Predicated region
    $region58: #{tpu_custom_call.1} parent=1 // pred_check
      _
    $region59: #{tpu_custom_call.1} parent=1 // pred_check_branch
      %443 = sbr.rel (0) target = $region61
    $region60: #{tpu_custom_call.1} parent=1 // pred_region
      %444 = dma.done [#allocation4], 128
    $region61: #{tpu_custom_call.1} parent=1 // pred_fallthru
      _
    %445 = vsyncpa [#allocation3], 1
    %446 = vsyncpa [#allocation6], 1
    %447 = vsyncpa [#allocation9], 1
    %448 = vsyncpa [#allocation4], 1

</llo_original>
